<compile_context>
chip_gen: v7x
topology: tpu7x:2x2x1
jax: 0.10.0
libtpu: 0.0.40
codegen_flags: <defaults>
</compile_context>

<pallas_src>
import functools

import jax
import jax.numpy as jnp
from jax.experimental import pallas as pl
from jax.experimental.pallas import tpu as pltpu


def _fm_kernel(F, D, e_ref, wt_ref, bias_ref, o_ref):
    # e_ref : (tb, F*D) f32  -- batch on sublanes, embeddings lane-dense
    # wt_ref: (F, tb)  f32  -- gathered fc weights, batch on lanes
    # bias_ref: (1,)   f32  -- scalar bias in SMEM
    # o_ref : (1, tb)  f32  -- lane-dense output row
    x = e_ref[...]                                   # (tb, F*D)
    xsq = x * x                                      # full-width square (VPU)

    sum_e = x[:, :D]                                 # (tb, D) running field sum
    sum_sq = xsq[:, :D]
    for f in range(1, F):                            # static unroll over fields
        lo = f * D
        sum_e = sum_e + x[:, lo:lo + D]
        sum_sq = sum_sq + xsq[:, lo:lo + D]

    # FM pairwise interaction: 0.5 * sum_d ((sum_f e)^2 - sum_f e^2)
    fm = 0.5 * jnp.sum(sum_e * sum_e - sum_sq, axis=-1)          # (tb,)
    # Linear term + bias (sublane reduction over F -> lane-major vector)
    linear = jnp.sum(wt_ref[...], axis=0) + bias_ref[0]          # (tb,)

    o_ref[...] = jax.nn.sigmoid(linear + fm)[None, :]            # (1, tb)


def fm_forward(data, embed_table, fc_table, fc_bias, offsets, *, tb=1024):
    """data: int32 [B, F] per-field indices; returns float32 [B]."""
    B, F = data.shape
    D = embed_table.shape[1]
    FD = F * D

    idx = data + offsets[None, :].astype(data.dtype)             # (B, F)

    # Gathers stay in XLA (glue). For bandwidth-bound cases e could also be
    # streamed as bf16 and upcast in-kernel; kept f32 here for exact validation.
    e = jnp.take(embed_table, idx, axis=0).astype(jnp.float32)   # (B, F, D)
    e = e.reshape(B, FD)                                         # lane-dense slab
    w_t = jnp.take(fc_table[:, 0], idx.T, axis=0).astype(jnp.float32)  # (F, B)
    bias = fc_bias.reshape((1,)).astype(jnp.float32)

    # Pick a batch tile: multiple of 128 (lane-dense output), big enough to
    # amortize per-step overhead, and >=2 grid steps when possible (v7x 2 TCs).
    tb = max(128, (min(int(tb), B) // 128) * 128)
    b_pad = pl.cdiv(B, tb) * tb
    if b_pad // tb < 2 and tb % 256 == 0:
        tb //= 2
        b_pad = pl.cdiv(B, tb) * tb

    if b_pad != B:
        e = jnp.pad(e, ((0, b_pad - B), (0, 0)))
        w_t = jnp.pad(w_t, ((0, 0), (0, b_pad - B)))

    kernel = functools.partial(_fm_kernel, F, D)
    out = pl.pallas_call(
        kernel,
        out_shape=jax.ShapeDtypeStruct((1, b_pad), jnp.float32),
        grid=(b_pad // tb,),
        in_specs=[
            pl.BlockSpec((tb, FD), lambda i: (i, 0)),            # embeddings
            pl.BlockSpec((F, tb), lambda i: (0, i)),             # fc weights (T)
            pl.BlockSpec(memory_space=pltpu.MemorySpace.SMEM),   # scalar bias
        ],
        out_specs=pl.BlockSpec((1, tb), lambda i: (0, i)),       # lane-dense out
        compiler_params=pltpu.CompilerParams(
            dimension_semantics=("parallel",)),
    )(e, w_t, bias)
    return out[0, :B]                                            # torch .squeeze(1)


def fm_reference(data, embed_table, fc_table, fc_bias, offsets):
    idx = data + offsets[None, :]
    e = jnp.take(embed_table, idx, axis=0)                       # (B, F, D)
    w = jnp.take(fc_table[:, 0], idx, axis=0)                    # (B, F)
    linear = jnp.sum(w, axis=1) + fc_bias[0]
    fm = 0.5 * jnp.sum(jnp.sum(e, axis=1) ** 2 - jnp.sum(e * e, axis=1), axis=-1)
    return jax.nn.sigmoid(linear + fm)


if __name__ == "__main__":
    key = jax.random.PRNGKey(0)
    feature_dims = (10, 20, 30, 40)                  # 4 fields
    embed_size = 32
    F = len(feature_dims)
    total = sum(feature_dims)

    offs, acc = [], 0
    for d_ in feature_dims:
        offs.append(acc)
        acc += d_
    offsets = jnp.asarray(offs, dtype=jnp.int32)

    k_emb, k_fc, k_bias, k_data = jax.random.split(key, 4)
    embed_table = 0.1 * jax.random.normal(k_emb, (total, embed_size), jnp.float32)
    fc_table = 0.1 * jax.random.normal(k_fc, (total, 1), jnp.float32)
    fc_bias = 0.1 * jax.random.normal(k_bias, (1,), jnp.float32)

    def make_data(k, b):
        cols = [jax.random.randint(jax.random.fold_in(k, f), (b,), 0, feature_dims[f])
                for f in range(F)]
        return jnp.stack(cols, axis=1).astype(jnp.int32)

    # Small batch (exercises padding path, single grid step).
    B = 8
    data = make_data(k_data, B)
    out = jax.block_until_ready(fm_forward(data, embed_table, fc_table, fc_bias, offsets))
    ref = fm_reference(data, embed_table, fc_table, fc_bias, offsets)
    assert out.shape == (B,)
    assert jnp.allclose(out, ref, atol=1e-5, rtol=1e-5)

    # Larger batch (exercises multi-step grid, no-padding path).
    B2 = 512
    data2 = make_data(jax.random.fold_in(k_data, 123), B2)
    out2 = jax.block_until_ready(fm_forward(data2, embed_table, fc_table, fc_bias, offsets))
    ref2 = fm_reference(data2, embed_table, fc_table, fc_bias, offsets)
    assert out2.shape == (B2,)
    assert jnp.allclose(out2, ref2, atol=1e-5, rtol=1e-5)

    print("KERNEL_OK")
</pallas_src>

<mosaic_0001>
module attributes {stable_mosaic.version = 11 : i64} {
  func.func @_fm_kernel(%arg0: i32, %arg1: memref<128x128xf32, #tpu.memory_space<vmem>>, %arg2: memref<4x128xf32, #tpu.memory_space<vmem>>, %arg3: memref<1xf32, #tpu.memory_space<smem>>, %arg4: memref<1x128xf32, #tpu.memory_space<vmem>>) attributes {dimension_semantics = [#tpu.dimension_semantics<parallel>], iteration_bounds = array<i64: 1>, scalar_prefetch = 0 : i64, scratch_operands = 0 : i64, tpu.core_type = #tpu.core_type<tc>, window_params = [{transform_indices = @transform_0, window_bounds = array<i64: 128, 128>}, {transform_indices = @transform_1, window_bounds = array<i64: 4, 128>}, {transform_indices = @transform_2, window_bounds = array<i64: 1>}, {transform_indices = @transform_3, window_bounds = array<i64: 1, 128>}]} {
    %c0 = arith.constant 0 : index
    %c0_0 = arith.constant 0 : index
    %0 = vector.load %arg1[%c0, %c0_0] : memref<128x128xf32, #tpu.memory_space<vmem>>, vector<128x128xf32>
    %1 = arith.mulf %0, %0 : vector<128x128xf32>
    %2 = vector.extract_strided_slice %0 {offsets = [0, 0], sizes = [128, 32], strides = [1, 1]} : vector<128x128xf32> to vector<128x32xf32>
    %3 = vector.extract_strided_slice %1 {offsets = [0, 0], sizes = [128, 32], strides = [1, 1]} : vector<128x128xf32> to vector<128x32xf32>
    %4 = vector.extract_strided_slice %0 {offsets = [0, 32], sizes = [128, 32], strides = [1, 1]} : vector<128x128xf32> to vector<128x32xf32>
    %5 = arith.addf %2, %4 : vector<128x32xf32>
    %6 = vector.extract_strided_slice %1 {offsets = [0, 32], sizes = [128, 32], strides = [1, 1]} : vector<128x128xf32> to vector<128x32xf32>
    %7 = arith.addf %3, %6 : vector<128x32xf32>
    %8 = vector.extract_strided_slice %0 {offsets = [0, 64], sizes = [128, 32], strides = [1, 1]} : vector<128x128xf32> to vector<128x32xf32>
    %9 = arith.addf %5, %8 : vector<128x32xf32>
    %10 = vector.extract_strided_slice %1 {offsets = [0, 64], sizes = [128, 32], strides = [1, 1]} : vector<128x128xf32> to vector<128x32xf32>
    %11 = arith.addf %7, %10 : vector<128x32xf32>
    %12 = vector.extract_strided_slice %0 {offsets = [0, 96], sizes = [128, 32], strides = [1, 1]} : vector<128x128xf32> to vector<128x32xf32>
    %13 = arith.addf %9, %12 : vector<128x32xf32>
    %14 = vector.extract_strided_slice %1 {offsets = [0, 96], sizes = [128, 32], strides = [1, 1]} : vector<128x128xf32> to vector<128x32xf32>
    %15 = arith.addf %11, %14 : vector<128x32xf32>
    %16 = arith.mulf %13, %13 : vector<128x32xf32>
    %17 = arith.subf %16, %15 : vector<128x32xf32>
    %cst = arith.constant dense<0.000000e+00> : vector<128xf32>
    %18 = vector.multi_reduction <add>, %17, %cst [1] : vector<128x32xf32> to vector<128xf32>
    %cst_1 = arith.constant 5.000000e-01 : f32
    %19 = vector.broadcast %cst_1 : f32 to vector<128xf32>
    %20 = arith.mulf %19, %18 : vector<128xf32>
    %c0_2 = arith.constant 0 : index
    %c0_3 = arith.constant 0 : index
    %21 = vector.load %arg2[%c0_2, %c0_3] : memref<4x128xf32, #tpu.memory_space<vmem>>, vector<4x128xf32>
    %cst_4 = arith.constant dense<0.000000e+00> : vector<128xf32>
    %22 = vector.multi_reduction <add>, %21, %cst_4 [0] : vector<4x128xf32> to vector<128xf32>
    %c0_5 = arith.constant 0 : index
    %23 = memref.load %arg3[%c0_5] : memref<1xf32, #tpu.memory_space<smem>>
    %24 = vector.broadcast %23 : f32 to vector<128xf32>
    %25 = arith.addf %22, %24 : vector<128xf32>
    %26 = arith.addf %25, %20 : vector<128xf32>
    %27 = arith.negf %26 : vector<128xf32>
    %28 = math.exp %27 : vector<128xf32>
    %cst_6 = arith.constant 1.000000e+00 : f32
    %29 = vector.broadcast %cst_6 : f32 to vector<128xf32>
    %30 = arith.addf %29, %28 : vector<128xf32>
    %31 = arith.divf %29, %30 : vector<128xf32>
    %32 = vector.shape_cast %31 : vector<128xf32> to vector<1x128xf32>
    %c0_7 = arith.constant 0 : index
    %c0_8 = arith.constant 0 : index
    %33 = vector.load %arg4[%c0_7, %c0_8] : memref<1x128xf32, #tpu.memory_space<vmem>>, vector<1x128xf32>
    tpu.vector_store %arg4[%c0_7, %c0_8], %32 {strides = array<i32>} : memref<1x128xf32, #tpu.memory_space<vmem>>, vector<1x128xf32>,
    return
  }
  func.func @transform_0(%arg0: i32) -> (i32, i32) {
    %c0_i32 = arith.constant 0 : i32
    %c0_i32_0 = arith.constant 0 : i32
    return %arg0, %c0_i32 : i32, i32
  }
  func.func @transform_1(%arg0: i32) -> (i32, i32) {
    %c0_i32 = arith.constant 0 : i32
    %c0_i32_0 = arith.constant 0 : i32
    return %c0_i32, %arg0 : i32, i32
  }
  func.func @transform_2(%arg0: i32) -> i32 {
    %c0_i32 = arith.constant 0 : i32
    %c0_i32_0 = arith.constant 0 : i32
    return %c0_i32 : i32
  }
  func.func @transform_3(%arg0: i32) -> (i32, i32) {
    %c0_i32 = arith.constant 0 : i32
    %c0_i32_0 = arith.constant 0 : i32
    return %c0_i32, %arg0 : i32, i32
  }
}

</mosaic_0001>

<llo_original>
// kernel: tpu_custom_call.1
$region0: #{tpu_custom_call.1}
  #allocation0 [shape = 'u32[]', space=smem, size = 0x4, offset = 0x4, fixed_abs, tag = 'smem constant byte address 0x4 - core index']
  #allocation1 [shape = 'u32[144,128]{1,0:T(1,128)}', space=vmem, size = 0x12000, scoped, tag = 'internal scratch']
  #allocation2 [shape = 'f32[1]{0:T(128)S(6)}', space=smem, size = 0x200, scoped, tag = 'scoped memory for tpu_custom_call.1']
  %s0 = inlined_call_operand.hbm [shape: f32[128,128], index: 0, kind: input, shape index: {}]
  %s1 = inlined_call_operand.vmem [shape: f32[4,128], index: 1, kind: input, shape index: {}]
  %s2 = inlined_call_operand.<no memory space> [shape: f32[1], index: 2, kind: input, shape index: {}]
  %s3 = inlined_call_operand.hbm [shape: f32[1,128], index: 3, kind: output, shape index: {}]
  %s4 = sld [smem:[#allocation0]]
  $region26: #{tpu_custom_call.1} parent=0
    _
  %s6 = ssub.s32 1, %s4
  %s7 = scalar_select 0, %s6, %s4
  %8 = sst [smem:[#allocation2]] %s2
  $region1: #{tpu_custom_call.1} parent=0
    #allocation3 [shape = 'u8[65536]{0}', space=vmem, size = 0x10000, scoped, tag = 'input window, operand 0, single buffered']
    #allocation4 [shape = 's32[1]{0}', space=sflag, size = 0x4, scoped, tag = 'scoped memory for tpu_custom_call.1']
    #allocation5 [shape = 's32[1]{0}', space=sflag, size = 0x4, scoped, tag = 'scoped memory for tpu_custom_call.1']
    #allocation6 [shape = 'u8[512]{0}', space=vmem, size = 0x400, scoped, tag = 'output window, operand 0, single buffered']
    %9 = vsyncpa [#allocation4], 0
    %10 = vsyncpa [#allocation5], 0
    // Predicated region
    $region2: #{tpu_custom_call.1} parent=1 // pred_check
      _
    $region3: #{tpu_custom_call.1} parent=1 // pred_check_branch
      %12 = sbr.rel (0) target = $region5
    $region4: #{tpu_custom_call.1} parent=1 // pred_region
      %s14 = ssub.s32 2048, 2048
      %15 = vsyncadd [#allocation4], %s14
      %s16 = sshll.u32 [#allocation3], 4
      %s17 = int_to_ptr.vmem [resolvable:$true] %s16
      %22 = dma.hbm_to_vmem [thread:$0]  %s0, 2048, %s17, [#allocation4], 128, 128, 8
    $region5: #{tpu_custom_call.1} parent=1 // pred_fallthru
      _
    // Predicated region
    $region6: #{tpu_custom_call.1} parent=1 // pred_check
      _
    $region7: #{tpu_custom_call.1} parent=1 // pred_check_branch
      %24 = sbr.rel (0) target = $region9
    $region8: #{tpu_custom_call.1} parent=1 // pred_region
      _
    $region9: #{tpu_custom_call.1} parent=1 // pred_fallthru
      _
    // Predicated region
    $region10: #{tpu_custom_call.1} parent=1 // pred_check
      _
    $region11: #{tpu_custom_call.1} parent=1 // pred_check_branch
      %26 = sbr.rel (0) target = $region13
    $region12: #{tpu_custom_call.1} parent=1 // pred_region
      _
    $region13: #{tpu_custom_call.1} parent=1 // pred_fallthru
      _
    // Predicated region
    $region14: #{tpu_custom_call.1} parent=1 // pred_check
      _
    $region15: #{tpu_custom_call.1} parent=1 // pred_check_branch
      %28 = sbr.rel (0) target = $region17
    $region16: #{tpu_custom_call.1} parent=1 // pred_region
      %29 = dma.done [#allocation4], 2048
    $region17: #{tpu_custom_call.1} parent=1 // pred_fallthru
      _
    %v30 = vld [vmem:[#allocation3] sm:$0xff]
    %v31 = vld [vmem:[#allocation3 + $0x8] sm:$0xff]
    %v32 = vld [vmem:[#allocation3 + $0x10] sm:$0xff]
    %v33 = vld [vmem:[#allocation3 + $0x18] sm:$0xff]
    %v34 = vld [vmem:[#allocation3 + $0x20] sm:$0xff]
    %v35 = vld [vmem:[#allocation3 + $0x28] sm:$0xff]
    %v36 = vld [vmem:[#allocation3 + $0x30] sm:$0xff]
    %v37 = vld [vmem:[#allocation3 + $0x38] sm:$0xff]
    %v38 = vld [vmem:[#allocation3 + $0x40] sm:$0xff]
    %v39 = vld [vmem:[#allocation3 + $0x48] sm:$0xff]
    %v40 = vld [vmem:[#allocation3 + $0x50] sm:$0xff]
    %v41 = vld [vmem:[#allocation3 + $0x58] sm:$0xff]
    %v42 = vld [vmem:[#allocation3 + $0x60] sm:$0xff]
    %v43 = vld [vmem:[#allocation3 + $0x68] sm:$0xff]
    %v44 = vld [vmem:[#allocation3 + $0x70] sm:$0xff]
    %v45 = vld [vmem:[#allocation3 + $0x78] sm:$0xff]
    %v46 = vmul.f32 %v30, %v30
    %v47 = vmul.f32 %v31, %v31
    %v48 = vmul.f32 %v32, %v32
    %v49 = vmul.f32 %v33, %v33
    %v50 = vmul.f32 %v34, %v34
    %v51 = vmul.f32 %v35, %v35
    %v52 = vmul.f32 %v36, %v36
    %v53 = vmul.f32 %v37, %v37
    %v54 = vmul.f32 %v38, %v38
    %v55 = vmul.f32 %v39, %v39
    %v56 = vmul.f32 %v40, %v40
    %v57 = vmul.f32 %v41, %v41
    %v58 = vmul.f32 %v42, %v42
    %v59 = vmul.f32 %v43, %v43
    %v60 = vmul.f32 %v44, %v44
    %v61 = vmul.f32 %v45, %v45
    %78 = vrot.lane.b32.xlu0 %v30, 96
    %v79 = vpop.permute.xlu0 %78
    %80 = vrot.lane.b32.xlu0 %v31, 96
    %v81 = vpop.permute.xlu0 %80
    %82 = vrot.lane.b32.xlu0 %v32, 96
    %v83 = vpop.permute.xlu0 %82
    %84 = vrot.lane.b32.xlu0 %v33, 96
    %v85 = vpop.permute.xlu0 %84
    %86 = vrot.lane.b32.xlu0 %v34, 96
    %v87 = vpop.permute.xlu0 %86
    %88 = vrot.lane.b32.xlu0 %v35, 96
    %v89 = vpop.permute.xlu0 %88
    %90 = vrot.lane.b32.xlu0 %v36, 96
    %v91 = vpop.permute.xlu0 %90
    %92 = vrot.lane.b32.xlu0 %v37, 96
    %v93 = vpop.permute.xlu0 %92
    %94 = vrot.lane.b32.xlu0 %v38, 96
    %v95 = vpop.permute.xlu0 %94
    %96 = vrot.lane.b32.xlu0 %v39, 96
    %v97 = vpop.permute.xlu0 %96
    %98 = vrot.lane.b32.xlu0 %v40, 96
    %v99 = vpop.permute.xlu0 %98
    %100 = vrot.lane.b32.xlu0 %v41, 96
    %v101 = vpop.permute.xlu0 %100
    %102 = vrot.lane.b32.xlu0 %v42, 96
    %v103 = vpop.permute.xlu0 %102
    %104 = vrot.lane.b32.xlu0 %v43, 96
    %v105 = vpop.permute.xlu0 %104
    %106 = vrot.lane.b32.xlu0 %v44, 96
    %v107 = vpop.permute.xlu0 %106
    %108 = vrot.lane.b32.xlu0 %v45, 96
    %v109 = vpop.permute.xlu0 %108
    %v126 = vadd.f32 %v30, %v79
    %v127 = vadd.f32 %v31, %v81
    %v128 = vadd.f32 %v32, %v83
    %v129 = vadd.f32 %v33, %v85
    %v130 = vadd.f32 %v34, %v87
    %v131 = vadd.f32 %v35, %v89
    %v132 = vadd.f32 %v36, %v91
    %v133 = vadd.f32 %v37, %v93
    %v134 = vadd.f32 %v38, %v95
    %v135 = vadd.f32 %v39, %v97
    %v136 = vadd.f32 %v40, %v99
    %v137 = vadd.f32 %v41, %v101
    %v138 = vadd.f32 %v42, %v103
    %v139 = vadd.f32 %v43, %v105
    %v140 = vadd.f32 %v44, %v107
    %v141 = vadd.f32 %v45, %v109
    %158 = vrot.lane.b32.xlu0 %v46, 96
    %v159 = vpop.permute.xlu0 %158
    %160 = vrot.lane.b32.xlu0 %v47, 96
    %v161 = vpop.permute.xlu0 %160
    %162 = vrot.lane.b32.xlu0 %v48, 96
    %v163 = vpop.permute.xlu0 %162
    %164 = vrot.lane.b32.xlu0 %v49, 96
    %v165 = vpop.permute.xlu0 %164
    %166 = vrot.lane.b32.xlu0 %v50, 96
    %v167 = vpop.permute.xlu0 %166
    %168 = vrot.lane.b32.xlu0 %v51, 96
    %v169 = vpop.permute.xlu0 %168
    %170 = vrot.lane.b32.xlu0 %v52, 96
    %v171 = vpop.permute.xlu0 %170
    %172 = vrot.lane.b32.xlu0 %v53, 96
    %v173 = vpop.permute.xlu0 %172
    %174 = vrot.lane.b32.xlu0 %v54, 96
    %v175 = vpop.permute.xlu0 %174
    %176 = vrot.lane.b32.xlu0 %v55, 96
    %v177 = vpop.permute.xlu0 %176
    %178 = vrot.lane.b32.xlu0 %v56, 96
    %v179 = vpop.permute.xlu0 %178
    %180 = vrot.lane.b32.xlu0 %v57, 96
    %v181 = vpop.permute.xlu0 %180
    %182 = vrot.lane.b32.xlu0 %v58, 96
    %v183 = vpop.permute.xlu0 %182
    %184 = vrot.lane.b32.xlu0 %v59, 96
    %v185 = vpop.permute.xlu0 %184
    %186 = vrot.lane.b32.xlu0 %v60, 96
    %v187 = vpop.permute.xlu0 %186
    %188 = vrot.lane.b32.xlu0 %v61, 96
    %v189 = vpop.permute.xlu0 %188
    %v206 = vadd.f32 %v46, %v159
    %v207 = vadd.f32 %v47, %v161
    %v208 = vadd.f32 %v48, %v163
    %v209 = vadd.f32 %v49, %v165
    %v210 = vadd.f32 %v50, %v167
    %v211 = vadd.f32 %v51, %v169
    %v212 = vadd.f32 %v52, %v171
    %v213 = vadd.f32 %v53, %v173
    %v214 = vadd.f32 %v54, %v175
    %v215 = vadd.f32 %v55, %v177
    %v216 = vadd.f32 %v56, %v179
    %v217 = vadd.f32 %v57, %v181
    %v218 = vadd.f32 %v58, %v183
    %v219 = vadd.f32 %v59, %v185
    %v220 = vadd.f32 %v60, %v187
    %v221 = vadd.f32 %v61, %v189
    %222 = vrot.lane.b32.xlu0 %v30, 64
    %v223 = vpop.permute.xlu0 %222
    %224 = vrot.lane.b32.xlu0 %v31, 64
    %v225 = vpop.permute.xlu0 %224
    %226 = vrot.lane.b32.xlu0 %v32, 64
    %v227 = vpop.permute.xlu0 %226
    %228 = vrot.lane.b32.xlu0 %v33, 64
    %v229 = vpop.permute.xlu0 %228
    %230 = vrot.lane.b32.xlu0 %v34, 64
    %v231 = vpop.permute.xlu0 %230
    %232 = vrot.lane.b32.xlu0 %v35, 64
    %v233 = vpop.permute.xlu0 %232
    %234 = vrot.lane.b32.xlu0 %v36, 64
    %v235 = vpop.permute.xlu0 %234
    %236 = vrot.lane.b32.xlu0 %v37, 64
    %v237 = vpop.permute.xlu0 %236
    %238 = vrot.lane.b32.xlu0 %v38, 64
    %v239 = vpop.permute.xlu0 %238
    %240 = vrot.lane.b32.xlu0 %v39, 64
    %v241 = vpop.permute.xlu0 %240
    %242 = vrot.lane.b32.xlu0 %v40, 64
    %v243 = vpop.permute.xlu0 %242
    %244 = vrot.lane.b32.xlu0 %v41, 64
    %v245 = vpop.permute.xlu0 %244
    %246 = vrot.lane.b32.xlu0 %v42, 64
    %v247 = vpop.permute.xlu0 %246
    %248 = vrot.lane.b32.xlu0 %v43, 64
    %v249 = vpop.permute.xlu0 %248
    %250 = vrot.lane.b32.xlu0 %v44, 64
    %v251 = vpop.permute.xlu0 %250
    %252 = vrot.lane.b32.xlu0 %v45, 64
    %v253 = vpop.permute.xlu0 %252
    %v270 = vadd.f32 %v126, %v223
    %v271 = vadd.f32 %v127, %v225
    %v272 = vadd.f32 %v128, %v227
    %v273 = vadd.f32 %v129, %v229
    %v274 = vadd.f32 %v130, %v231
    %v275 = vadd.f32 %v131, %v233
    %v276 = vadd.f32 %v132, %v235
    %v277 = vadd.f32 %v133, %v237
    %v278 = vadd.f32 %v134, %v239
    %v279 = vadd.f32 %v135, %v241
    %v280 = vadd.f32 %v136, %v243
    %v281 = vadd.f32 %v137, %v245
    %v282 = vadd.f32 %v138, %v247
    %v283 = vadd.f32 %v139, %v249
    %v284 = vadd.f32 %v140, %v251
    %v285 = vadd.f32 %v141, %v253
    %286 = vrot.lane.b32.xlu0 %v46, 64
    %v287 = vpop.permute.xlu0 %286
    %288 = vrot.lane.b32.xlu0 %v47, 64
    %v289 = vpop.permute.xlu0 %288
    %290 = vrot.lane.b32.xlu0 %v48, 64
    %v291 = vpop.permute.xlu0 %290
    %292 = vrot.lane.b32.xlu0 %v49, 64
    %v293 = vpop.permute.xlu0 %292
    %294 = vrot.lane.b32.xlu0 %v50, 64
    %v295 = vpop.permute.xlu0 %294
    %296 = vrot.lane.b32.xlu0 %v51, 64
    %v297 = vpop.permute.xlu0 %296
    %298 = vrot.lane.b32.xlu0 %v52, 64
    %v299 = vpop.permute.xlu0 %298
    %300 = vrot.lane.b32.xlu0 %v53, 64
    %v301 = vpop.permute.xlu0 %300
    %302 = vrot.lane.b32.xlu0 %v54, 64
    %v303 = vpop.permute.xlu0 %302
    %304 = vrot.lane.b32.xlu0 %v55, 64
    %v305 = vpop.permute.xlu0 %304
    %306 = vrot.lane.b32.xlu0 %v56, 64
    %v307 = vpop.permute.xlu0 %306
    %308 = vrot.lane.b32.xlu0 %v57, 64
    %v309 = vpop.permute.xlu0 %308
    %310 = vrot.lane.b32.xlu0 %v58, 64
    %v311 = vpop.permute.xlu0 %310
    %312 = vrot.lane.b32.xlu0 %v59, 64
    %v313 = vpop.permute.xlu0 %312
    %314 = vrot.lane.b32.xlu0 %v60, 64
    %v315 = vpop.permute.xlu0 %314
    %316 = vrot.lane.b32.xlu0 %v61, 64
    %v317 = vpop.permute.xlu0 %316
    %v334 = vadd.f32 %v206, %v287
    %v335 = vadd.f32 %v207, %v289
    %v336 = vadd.f32 %v208, %v291
    %v337 = vadd.f32 %v209, %v293
    %v338 = vadd.f32 %v210, %v295
    %v339 = vadd.f32 %v211, %v297
    %v340 = vadd.f32 %v212, %v299
    %v341 = vadd.f32 %v213, %v301
    %v342 = vadd.f32 %v214, %v303
    %v343 = vadd.f32 %v215, %v305
    %v344 = vadd.f32 %v216, %v307
    %v345 = vadd.f32 %v217, %v309
    %v346 = vadd.f32 %v218, %v311
    %v347 = vadd.f32 %v219, %v313
    %v348 = vadd.f32 %v220, %v315
    %v349 = vadd.f32 %v221, %v317
    %350 = vrot.lane.b32.xlu0 %v30, 32
    %v351 = vpop.permute.xlu0 %350
    %352 = vrot.lane.b32.xlu0 %v31, 32
    %v353 = vpop.permute.xlu0 %352
    %354 = vrot.lane.b32.xlu0 %v32, 32
    %v355 = vpop.permute.xlu0 %354
    %356 = vrot.lane.b32.xlu0 %v33, 32
    %v357 = vpop.permute.xlu0 %356
    %358 = vrot.lane.b32.xlu0 %v34, 32
    %v359 = vpop.permute.xlu0 %358
    %360 = vrot.lane.b32.xlu0 %v35, 32
    %v361 = vpop.permute.xlu0 %360
    %362 = vrot.lane.b32.xlu0 %v36, 32
    %v363 = vpop.permute.xlu0 %362
    %364 = vrot.lane.b32.xlu0 %v37, 32
    %v365 = vpop.permute.xlu0 %364
    %366 = vrot.lane.b32.xlu0 %v38, 32
    %v367 = vpop.permute.xlu0 %366
    %368 = vrot.lane.b32.xlu0 %v39, 32
    %v369 = vpop.permute.xlu0 %368
    %370 = vrot.lane.b32.xlu0 %v40, 32
    %v371 = vpop.permute.xlu0 %370
    %372 = vrot.lane.b32.xlu0 %v41, 32
    %v373 = vpop.permute.xlu0 %372
    %374 = vrot.lane.b32.xlu0 %v42, 32
    %v375 = vpop.permute.xlu0 %374
    %376 = vrot.lane.b32.xlu0 %v43, 32
    %v377 = vpop.permute.xlu0 %376
    %378 = vrot.lane.b32.xlu0 %v44, 32
    %v379 = vpop.permute.xlu0 %378
    %380 = vrot.lane.b32.xlu0 %v45, 32
    %v381 = vpop.permute.xlu0 %380
    %v398 = vadd.f32 %v270, %v351
    %v399 = vadd.f32 %v271, %v353
    %v400 = vadd.f32 %v272, %v355
    %v401 = vadd.f32 %v273, %v357
    %v402 = vadd.f32 %v274, %v359
    %v403 = vadd.f32 %v275, %v361
    %v404 = vadd.f32 %v276, %v363
    %v405 = vadd.f32 %v277, %v365
    %v406 = vadd.f32 %v278, %v367
    %v407 = vadd.f32 %v279, %v369
    %v408 = vadd.f32 %v280, %v371
    %v409 = vadd.f32 %v281, %v373
    %v410 = vadd.f32 %v282, %v375
    %v411 = vadd.f32 %v283, %v377
    %v412 = vadd.f32 %v284, %v379
    %v413 = vadd.f32 %v285, %v381
    %414 = vrot.lane.b32.xlu0 %v46, 32
    %v415 = vpop.permute.xlu0 %414
    %416 = vrot.lane.b32.xlu0 %v47, 32
    %v417 = vpop.permute.xlu0 %416
    %418 = vrot.lane.b32.xlu0 %v48, 32
    %v419 = vpop.permute.xlu0 %418
    %420 = vrot.lane.b32.xlu0 %v49, 32
    %v421 = vpop.permute.xlu0 %420
    %422 = vrot.lane.b32.xlu0 %v50, 32
    %v423 = vpop.permute.xlu0 %422
    %424 = vrot.lane.b32.xlu0 %v51, 32
    %v425 = vpop.permute.xlu0 %424
    %426 = vrot.lane.b32.xlu0 %v52, 32
    %v427 = vpop.permute.xlu0 %426
    %428 = vrot.lane.b32.xlu0 %v53, 32
    %v429 = vpop.permute.xlu0 %428
    %430 = vrot.lane.b32.xlu0 %v54, 32
    %v431 = vpop.permute.xlu0 %430
    %432 = vrot.lane.b32.xlu0 %v55, 32
    %v433 = vpop.permute.xlu0 %432
    %434 = vrot.lane.b32.xlu0 %v56, 32
    %v435 = vpop.permute.xlu0 %434
    %436 = vrot.lane.b32.xlu0 %v57, 32
    %v437 = vpop.permute.xlu0 %436
    %438 = vrot.lane.b32.xlu0 %v58, 32
    %v439 = vpop.permute.xlu0 %438
    %440 = vrot.lane.b32.xlu0 %v59, 32
    %v441 = vpop.permute.xlu0 %440
    %442 = vrot.lane.b32.xlu0 %v60, 32
    %v443 = vpop.permute.xlu0 %442
    %444 = vrot.lane.b32.xlu0 %v61, 32
    %v445 = vpop.permute.xlu0 %444
    %v462 = vadd.f32 %v334, %v415
    %v463 = vadd.f32 %v335, %v417
    %v464 = vadd.f32 %v336, %v419
    %v465 = vadd.f32 %v337, %v421
    %v466 = vadd.f32 %v338, %v423
    %v467 = vadd.f32 %v339, %v425
    %v468 = vadd.f32 %v340, %v427
    %v469 = vadd.f32 %v341, %v429
    %v470 = vadd.f32 %v342, %v431
    %v471 = vadd.f32 %v343, %v433
    %v472 = vadd.f32 %v344, %v435
    %v473 = vadd.f32 %v345, %v437
    %v474 = vadd.f32 %v346, %v439
    %v475 = vadd.f32 %v347, %v441
    %v476 = vadd.f32 %v348, %v443
    %v477 = vadd.f32 %v349, %v445
    %v478 = vmul.f32 %v398, %v398
    %v479 = vmul.f32 %v399, %v399
    %v480 = vmul.f32 %v400, %v400
    %v481 = vmul.f32 %v401, %v401
    %v482 = vmul.f32 %v402, %v402
    %v483 = vmul.f32 %v403, %v403
    %v484 = vmul.f32 %v404, %v404
    %v485 = vmul.f32 %v405, %v405
    %v486 = vmul.f32 %v406, %v406
    %v487 = vmul.f32 %v407, %v407
    %v488 = vmul.f32 %v408, %v408
    %v489 = vmul.f32 %v409, %v409
    %v490 = vmul.f32 %v410, %v410
    %v491 = vmul.f32 %v411, %v411
    %v492 = vmul.f32 %v412, %v412
    %v493 = vmul.f32 %v413, %v413
    %v494 = vsub.f32 %v478, %v462
    %v495 = vsub.f32 %v479, %v463
    %v496 = vsub.f32 %v480, %v464
    %v497 = vsub.f32 %v481, %v465
    %v498 = vsub.f32 %v482, %v466
    %v499 = vsub.f32 %v483, %v467
    %v500 = vsub.f32 %v484, %v468
    %v501 = vsub.f32 %v485, %v469
    %v502 = vsub.f32 %v486, %v470
    %v503 = vsub.f32 %v487, %v471
    %v504 = vsub.f32 %v488, %v472
    %v505 = vsub.f32 %v489, %v473
    %v506 = vsub.f32 %v490, %v474
    %v507 = vsub.f32 %v491, %v475
    %v508 = vsub.f32 %v492, %v476
    %v509 = vsub.f32 %v493, %v477
    %vm510 = vcmask 261120
    %v511 = vsel %vm510, %v494, 0.0
    %512 = vadd.xlane.f32.xlu0 %v511
    %v513 = vpop.xlane.xlu0 %512
    %v514 = vsel %vm510, %v495, 0.0
    %515 = vadd.xlane.f32.xlu0 %v514
    %v516 = vpop.xlane.xlu0 %515
    %v517 = vsel %vm510, %v496, 0.0
    %518 = vadd.xlane.f32.xlu0 %v517
    %v519 = vpop.xlane.xlu0 %518
    %v520 = vsel %vm510, %v497, 0.0
    %521 = vadd.xlane.f32.xlu0 %v520
    %v522 = vpop.xlane.xlu0 %521
    %v523 = vsel %vm510, %v498, 0.0
    %524 = vadd.xlane.f32.xlu0 %v523
    %v525 = vpop.xlane.xlu0 %524
    %v526 = vsel %vm510, %v499, 0.0
    %527 = vadd.xlane.f32.xlu0 %v526
    %v528 = vpop.xlane.xlu0 %527
    %v529 = vsel %vm510, %v500, 0.0
    %530 = vadd.xlane.f32.xlu0 %v529
    %v531 = vpop.xlane.xlu0 %530
    %v532 = vsel %vm510, %v501, 0.0
    %533 = vadd.xlane.f32.xlu0 %v532
    %v534 = vpop.xlane.xlu0 %533
    %v535 = vsel %vm510, %v502, 0.0
    %536 = vadd.xlane.f32.xlu0 %v535
    %v537 = vpop.xlane.xlu0 %536
    %v538 = vsel %vm510, %v503, 0.0
    %539 = vadd.xlane.f32.xlu0 %v538
    %v540 = vpop.xlane.xlu0 %539
    %v541 = vsel %vm510, %v504, 0.0
    %542 = vadd.xlane.f32.xlu0 %v541
    %v543 = vpop.xlane.xlu0 %542
    %v544 = vsel %vm510, %v505, 0.0
    %545 = vadd.xlane.f32.xlu0 %v544
    %v546 = vpop.xlane.xlu0 %545
    %v547 = vsel %vm510, %v506, 0.0
    %548 = vadd.xlane.f32.xlu0 %v547
    %v549 = vpop.xlane.xlu0 %548
    %v550 = vsel %vm510, %v507, 0.0
    %551 = vadd.xlane.f32.xlu0 %v550
    %v552 = vpop.xlane.xlu0 %551
    %v553 = vsel %vm510, %v508, 0.0
    %554 = vadd.xlane.f32.xlu0 %v553
    %v555 = vpop.xlane.xlu0 %554
    %v556 = vsel %vm510, %v509, 0.0
    %557 = vadd.xlane.f32.xlu0 %v556
    %v558 = vpop.xlane.xlu0 %557
    %v559 = vmul.f32 %v513, 0.5
    %v560 = vmul.f32 %v516, 0.5
    %v561 = vmul.f32 %v519, 0.5
    %v562 = vmul.f32 %v522, 0.5
    %v563 = vmul.f32 %v525, 0.5
    %v564 = vmul.f32 %v528, 0.5
    %v565 = vmul.f32 %v531, 0.5
    %v566 = vmul.f32 %v534, 0.5
    %v567 = vmul.f32 %v537, 0.5
    %v568 = vmul.f32 %v540, 0.5
    %v569 = vmul.f32 %v543, 0.5
    %v570 = vmul.f32 %v546, 0.5
    %v571 = vmul.f32 %v549, 0.5
    %v572 = vmul.f32 %v552, 0.5
    %v573 = vmul.f32 %v555, 0.5
    %v574 = vmul.f32 %v558, 0.5
    %v575 = vld [vmem:[%s1] sm:$0xf]
    %vm576 = vcmask 1043456
    %v577 = vsel %vm576, %v575, 0.0
    %v578 = vrot.slane %v577, 4
    %v579 = vadd.f32 %v577, %v578
    %v580 = vrot.slane %v579, 2
    %v581 = vadd.f32 %v579, %v580
    %v582 = vrot.slane %v581, 1
    %v583 = vadd.f32 %v581, %v582
    %s584 = sld [smem:[#allocation2]]
    %v585 = vstv %s584
    %v586 = vadd.f32 %v583, %v585
    %v603 = vlaneseq
    %v604 = vand.u32 %v603, 127
    %v605 = vlaneseq
    %v606 = vshrl.u32 %v605, 7
    %v607 = vsub.s32 %v604, %v606
    %v608 = vrot.slane %v559, %v607
    %v609 = vadd.s32 %v604, 4294967288
    %v610 = vlaneseq
    %v611 = vshrl.u32 %v610, 7
    %v612 = vsub.s32 %v609, %v611
    %v613 = vrot.slane %v560, %v612
    %vm614 = vcmask 130112
    %v615 = vsel %vm614, %v613, %v608
    %v616 = vadd.s32 %v604, 4294967280
    %v617 = vlaneseq
    %v618 = vshrl.u32 %v617, 7
    %v619 = vsub.s32 %v616, %v618
    %v620 = vrot.slane %v561, %v619
    %vm621 = vcmask 195712
    %v622 = vsel %vm621, %v620, %v615
    %v623 = vadd.s32 %v604, 4294967272
    %v624 = vlaneseq
    %v625 = vshrl.u32 %v624, 7
    %v626 = vsub.s32 %v623, %v625
    %v627 = vrot.slane %v562, %v626
    %vm628 = vcmask 261312
    %v629 = vsel %vm628, %v627, %v622
    %v630 = vadd.s32 %v604, 4294967264
    %v631 = vlaneseq
    %v632 = vshrl.u32 %v631, 7
    %v633 = vsub.s32 %v630, %v632
    %v634 = vrot.slane %v563, %v633
    %vm635 = vcmask 326912
    %v636 = vsel %vm635, %v634, %v629
    %v637 = vadd.s32 %v604, 4294967256
    %v638 = vlaneseq
    %v639 = vshrl.u32 %v638, 7
    %v640 = vsub.s32 %v637, %v639
    %v641 = vrot.slane %v564, %v640
    %vm642 = vcmask 392512
    %v643 = vsel %vm642, %v641, %v636
    %v644 = vadd.s32 %v604, 4294967248
    %v645 = vlaneseq
    %v646 = vshrl.u32 %v645, 7
    %v647 = vsub.s32 %v644, %v646
    %v648 = vrot.slane %v565, %v647
    %vm649 = vcmask 458112
    %v650 = vsel %vm649, %v648, %v643
    %v651 = vadd.s32 %v604, 4294967240
    %v652 = vlaneseq
    %v653 = vshrl.u32 %v652, 7
    %v654 = vsub.s32 %v651, %v653
    %v655 = vrot.slane %v566, %v654
    %vm656 = vcmask 523712
    %v657 = vsel %vm656, %v655, %v650
    %v658 = vadd.s32 %v604, 4294967232
    %v659 = vlaneseq
    %v660 = vshrl.u32 %v659, 7
    %v661 = vsub.s32 %v658, %v660
    %v662 = vrot.slane %v567, %v661
    %vm663 = vcmask 589312
    %v664 = vsel %vm663, %v662, %v657
    %v665 = vadd.s32 %v604, 4294967224
    %v666 = vlaneseq
    %v667 = vshrl.u32 %v666, 7
    %v668 = vsub.s32 %v665, %v667
    %v669 = vrot.slane %v568, %v668
    %vm670 = vcmask 654912
    %v671 = vsel %vm670, %v669, %v664
    %v672 = vadd.s32 %v604, 4294967216
    %v673 = vlaneseq
    %v674 = vshrl.u32 %v673, 7
    %v675 = vsub.s32 %v672, %v674
    %v676 = vrot.slane %v569, %v675
    %vm677 = vcmask 720512
    %v678 = vsel %vm677, %v676, %v671
    %v679 = vadd.s32 %v604, 4294967208
    %v680 = vlaneseq
    %v681 = vshrl.u32 %v680, 7
    %v682 = vsub.s32 %v679, %v681
    %v683 = vrot.slane %v570, %v682
    %vm684 = vcmask 786112
    %v685 = vsel %vm684, %v683, %v678
    %v686 = vadd.s32 %v604, 4294967200
    %v687 = vlaneseq
    %v688 = vshrl.u32 %v687, 7
    %v689 = vsub.s32 %v686, %v688
    %v690 = vrot.slane %v571, %v689
    %vm691 = vcmask 851712
    %v692 = vsel %vm691, %v690, %v685
    %v693 = vadd.s32 %v604, 4294967192
    %v694 = vlaneseq
    %v695 = vshrl.u32 %v694, 7
    %v696 = vsub.s32 %v693, %v695
    %v697 = vrot.slane %v572, %v696
    %vm698 = vcmask 917312
    %v699 = vsel %vm698, %v697, %v692
    %v700 = vadd.s32 %v604, 4294967184
    %v701 = vlaneseq
    %v702 = vshrl.u32 %v701, 7
    %v703 = vsub.s32 %v700, %v702
    %v704 = vrot.slane %v573, %v703
    %vm705 = vcmask 982912
    %v706 = vsel %vm705, %v704, %v699
    %v707 = vadd.s32 %v604, 4294967176
    %v708 = vlaneseq
    %v709 = vshrl.u32 %v708, 7
    %v710 = vsub.s32 %v707, %v709
    %v711 = vrot.slane %v574, %v710
    %vm712 = vcmask 1048512
    %v713 = vsel %vm712, %v711, %v706
    %v715 = vadd.f32 %v586, %v713
    %v716 = vxor.u32 %v715, 2147483648
    %v717 = vmul.f32 %v716, 1.442695
    %v718 = vpow.pop %v717
    %v719 = vadd.f32 %v718, 1.0
    %v720 = vrcp.pop %v719
    %v721 = vmul.f32 1.0, %v720
    %722 = vst [vmem:[#allocation6] sm:$0x1] %v721
    // Predicated region
    $region18: #{tpu_custom_call.1} parent=1 // pred_check
      _
    $region19: #{tpu_custom_call.1} parent=1 // pred_check_branch
      %724 = sbr.rel (0) target = $region21
    $region20: #{tpu_custom_call.1} parent=1 // pred_region
      %s726 = ssub.s32 16, 16
      %727 = vsyncadd [#allocation5], %s726
      %s729 = sshll.u32 [#allocation6], 4
      %s730 = int_to_ptr.vmem [resolvable:$true] %s729
      %732 = dma.vmem_to_hbm [thread:$0]  %s730, 16, %s3, [#allocation5]
    $region21: #{tpu_custom_call.1} parent=1 // pred_fallthru
      _
    // Predicated region
    $region22: #{tpu_custom_call.1} parent=1 // pred_check
      _
    $region23: #{tpu_custom_call.1} parent=1 // pred_check_branch
      %734 = sbr.rel (0) target = $region25
    $region24: #{tpu_custom_call.1} parent=1 // pred_region
      %735 = dma.done [#allocation5], 16
    $region25: #{tpu_custom_call.1} parent=1 // pred_fallthru
      _
    %736 = vsyncpa [#allocation4], 1
    %737 = vsyncpa [#allocation5], 1

</llo_original>
